<compile_context>
chip_gen: v5e
topology: v5e:2x2
jax: 0.10.0
libtpu: 0.0.40
codegen_flags: <defaults>
</compile_context>

<pallas_src>
import jax
import jax.numpy as jnp
from jax import lax
from jax.experimental import pallas as pl
from jax.experimental.pallas import tpu as pltpu

LN_EPS = 1e-5


def _critic_kernel(obs_ref, act_ref,
                   wt_ref, bt_ref, g_ref, beta_ref,
                   wh_ref, wa_ref, b1_ref,
                   w2_ref, b2_ref,
                   w3_ref, b3_ref,
                   q_ref):
    w_dtype = wt_ref.dtype
    obs = obs_ref[...].astype(w_dtype)
    act = act_ref[...].astype(w_dtype)

    # --- trunk: Linear -> LayerNorm -> Tanh (statistics & activations in f32) ---
    t = jnp.dot(obs, wt_ref[...], preferred_element_type=jnp.float32) + bt_ref[...]
    mean = jnp.mean(t, axis=-1, keepdims=True)
    var = jnp.mean(jnp.square(t - mean), axis=-1, keepdims=True)
    h = (t - mean) * lax.rsqrt(var + LN_EPS)
    h = jnp.tanh(h * g_ref[...] + beta_ref[...])

    # --- fused Q heads, layer 1: concat([h, act]) @ [W1_head1 | W1_head2] ---
    x = (jnp.dot(h.astype(w_dtype), wh_ref[...], preferred_element_type=jnp.float32)
         + jnp.dot(act, wa_ref[...], preferred_element_type=jnp.float32)
         + b1_ref[...])
    x = jnp.maximum(x, 0.0)

    # --- fused layer 2: block-diagonal [2H, 2H] weight ---
    x = jnp.dot(x.astype(w_dtype), w2_ref[...],
                preferred_element_type=jnp.float32) + b2_ref[...]
    x = jnp.maximum(x, 0.0)

    # --- final hidden -> 1 per head: VPU multiply + lane reduction (off the MXU) ---
    H = wh_ref.shape[1] // 2
    y = x * w3_ref[...]                                   # [TB, 2H]
    q1 = jnp.sum(y[:, :H], axis=-1, keepdims=True)
    q2 = jnp.sum(y[:, H:], axis=-1, keepdims=True)
    q_ref[...] = (jnp.concatenate([q1, q2], axis=-1) + b3_ref[...]).astype(q_ref.dtype)


def critic_forward(obs, action, params, *, block_b=256):
    """obs: [B, repr_dim], action: [B, action_dim] -> (q1 [B,1], q2 [B,1])."""
    B, repr_dim = obs.shape
    action_dim = action.shape[1]

    tb = min(block_b, B)
    if tb != B and tb % 8 != 0:          # second-to-last block dim: multiple of 8 or full
        tb = max(8, (tb // 8) * 8)

    def row_spec(d):
        return pl.BlockSpec((tb, d), lambda i: (i, 0))

    weight_args = (params["wt"], params["bt"], params["ln_g"], params["ln_b"],
                   params["w1h"], params["w1a"], params["b1"],
                   params["w2bd"], params["b2"],
                   params["w3"], params["b3"])

    in_specs = ([row_spec(repr_dim), row_spec(action_dim)]
                + [pl.BlockSpec(w.shape, lambda i: (0, 0)) for w in weight_args])

    q = pl.pallas_call(
        _critic_kernel,
        grid=(pl.cdiv(B, tb),),
        out_shape=jax.ShapeDtypeStruct((B, 2), jnp.float32),
        in_specs=in_specs,
        out_specs=row_spec(2),
        compiler_params=pltpu.CompilerParams(
            dimension_semantics=("parallel",),          # v7x: shard batch over 2 TCs
            vmem_limit_bytes=48 * 1024 * 1024),         # above scoped default, < v7x 64 MiB
    )(obs, action, *weight_args)
    return q[:, 0:1], q[:, 1:2]


# ----------------------------- parameters --------------------------------- #

def init_params(key, repr_dim, action_dim, feature_dim, hidden_dim):
    """Raw (per-head) parameters in [in, out] layout, matching PyTorch x @ W.T."""
    ks = jax.random.split(key, 7)

    def lin(k, fan_in, fan_out):
        kw, kb = jax.random.split(k)
        scale = 1.0 / jnp.sqrt(fan_in)
        w = jax.random.uniform(kw, (fan_in, fan_out), jnp.float32, -scale, scale)
        b = jax.random.uniform(kb, (1, fan_out), jnp.float32, -scale, scale)
        return w, b

    p = {}
    p["wt"], p["bt"] = lin(ks[0], repr_dim, feature_dim)
    p["ln_g"] = jnp.ones((1, feature_dim), jnp.float32)
    p["ln_b"] = jnp.zeros((1, feature_dim), jnp.float32)
    p["w1"], p["b1"] = lin(ks[1], feature_dim + action_dim, hidden_dim)
    p["w12"], p["b12"] = lin(ks[2], hidden_dim, hidden_dim)
    p["w13"], p["b13"] = lin(ks[3], hidden_dim, 1)
    p["w2"], p["b2"] = lin(ks[4], feature_dim + action_dim, hidden_dim)
    p["w22"], p["b22"] = lin(ks[5], hidden_dim, hidden_dim)
    p["w23"], p["b23"] = lin(ks[6], hidden_dim, 1)
    return p


def pack_params(p, weight_dtype=jnp.float32):
    """Fuse the two Q heads host-side into the kernel's weight layout.

    Large matmul weights may be cast to bfloat16; biases / LN params / the final
    [1, 2H] row stay f32 (matmuls accumulate in f32 regardless).
    """
    F = p["wt"].shape[1]
    H = p["w12"].shape[0]
    w1, w2 = p["w1"], p["w2"]
    zeros = jnp.zeros((H, H), jnp.float32)
    return dict(
        wt=p["wt"].astype(weight_dtype),
        bt=p["bt"], ln_g=p["ln_g"], ln_b=p["ln_b"],
        # layer 1: split concat([h, act]) into h-part / action-part, heads side by side
        w1h=jnp.concatenate([w1[:F], w2[:F]], axis=1).astype(weight_dtype),   # [F, 2H]
        w1a=jnp.concatenate([w1[F:], w2[F:]], axis=1).astype(weight_dtype),   # [A, 2H]
        b1=jnp.concatenate([p["b1"], p["b2"]], axis=1),                       # [1, 2H]
        # layer 2: block-diagonal fusion (fine for small hidden_dim)
        w2bd=jnp.block([[p["w12"], zeros],
                        [zeros, p["w22"]]]).astype(weight_dtype),             # [2H, 2H]
        b2=jnp.concatenate([p["b12"], p["b22"]], axis=1),                     # [1, 2H]
        # layer 3 (hidden -> 1 per head) as a packed row for VPU+XLU evaluation
        w3=jnp.concatenate([p["w13"][:, 0], p["w23"][:, 0]])[None, :],        # [1, 2H]
        b3=jnp.concatenate([p["b13"], p["b23"]], axis=1),                     # [1, 2]
    )


# ------------------------------ reference --------------------------------- #

def _reference(obs, action, p):
    t = obs @ p["wt"] + p["bt"]
    mean = t.mean(-1, keepdims=True)
    var = ((t - mean) ** 2).mean(-1, keepdims=True)
    h = (t - mean) / jnp.sqrt(var + LN_EPS)
    h = jnp.tanh(h * p["ln_g"] + p["ln_b"])
    ha = jnp.concatenate([h, action], axis=-1)

    def head(w1, b1, w2, b2, w3, b3):
        x = jnp.maximum(ha @ w1 + b1, 0.0)
        x = jnp.maximum(x @ w2 + b2, 0.0)
        return x @ w3 + b3

    q1 = head(p["w1"], p["b1"], p["w12"], p["b12"], p["w13"], p["b13"])
    q2 = head(p["w2"], p["b2"], p["w22"], p["b22"], p["w23"], p["b23"])
    return q1, q2


if __name__ == "__main__":
    # small shapes consistent with Critic(repr_dim, action_shape, feature_dim, hidden_dim)
    B, repr_dim, action_dim, feature_dim, hidden_dim = 16, 32, 4, 32, 32

    key = jax.random.PRNGKey(0)
    k_obs, k_act, k_par = jax.random.split(key, 3)
    obs = jax.random.normal(k_obs, (B, repr_dim), jnp.float32)
    action = jax.random.normal(k_act, (B, action_dim), jnp.float32)

    raw = init_params(k_par, repr_dim, action_dim, feature_dim, hidden_dim)
    q1_ref, q2_ref = _reference(obs, action, raw)

    # f32 weights; block_b=8 forces a 2-step batch grid (exercises pipelining path).
    q1, q2 = critic_forward(obs, action, pack_params(raw), block_b=8)
    jax.block_until_ready((q1, q2))
    assert q1.shape == (B, 1) and q2.shape == (B, 1)
    assert jnp.allclose(q1, q1_ref, atol=1e-4, rtol=1e-4)
    assert jnp.allclose(q2, q2_ref, atol=1e-4, rtol=1e-4)

    # bf16 weight path (f32 accumulation) -- looser tolerance vs the f32 reference.
    q1b, q2b = critic_forward(obs, action, pack_params(raw, jnp.bfloat16), block_b=8)
    jax.block_until_ready((q1b, q2b))
    assert jnp.allclose(q1b, q1_ref, atol=5e-2, rtol=5e-2)
    assert jnp.allclose(q2b, q2_ref, atol=5e-2, rtol=5e-2)

    print("KERNEL_OK")
</pallas_src>

<mosaic_0001>
module attributes {stable_mosaic.version = 11 : i64} {
  func.func @_critic_kernel(%arg0: i32, %arg1: memref<8x32xf32, #tpu.memory_space<vmem>>, %arg2: memref<8x4xf32, #tpu.memory_space<vmem>>, %arg3: memref<32x32xf32, #tpu.memory_space<vmem>>, %arg4: memref<1x32xf32, #tpu.memory_space<vmem>>, %arg5: memref<1x32xf32, #tpu.memory_space<vmem>>, %arg6: memref<1x32xf32, #tpu.memory_space<vmem>>, %arg7: memref<32x64xf32, #tpu.memory_space<vmem>>, %arg8: memref<4x64xf32, #tpu.memory_space<vmem>>, %arg9: memref<1x64xf32, #tpu.memory_space<vmem>>, %arg10: memref<64x64xf32, #tpu.memory_space<vmem>>, %arg11: memref<1x64xf32, #tpu.memory_space<vmem>>, %arg12: memref<1x64xf32, #tpu.memory_space<vmem>>, %arg13: memref<1x2xf32, #tpu.memory_space<vmem>>, %arg14: memref<8x2xf32, #tpu.memory_space<vmem>>) attributes {dimension_semantics = [#tpu.dimension_semantics<parallel>], iteration_bounds = array<i64: 2>, scalar_prefetch = 0 : i64, scratch_operands = 0 : i64, tpu.core_type = #tpu.core_type<tc>, window_params = [{transform_indices = @transform_0, window_bounds = array<i64: 8, 32>}, {transform_indices = @transform_1, window_bounds = array<i64: 8, 4>}, {pipeline_mode = #tpu.pipeline_mode<synchronous>, transform_indices = @transform_2, window_bounds = array<i64: 32, 32>}, {pipeline_mode = #tpu.pipeline_mode<synchronous>, transform_indices = @transform_3, window_bounds = array<i64: 1, 32>}, {pipeline_mode = #tpu.pipeline_mode<synchronous>, transform_indices = @transform_4, window_bounds = array<i64: 1, 32>}, {pipeline_mode = #tpu.pipeline_mode<synchronous>, transform_indices = @transform_5, window_bounds = array<i64: 1, 32>}, {pipeline_mode = #tpu.pipeline_mode<synchronous>, transform_indices = @transform_6, window_bounds = array<i64: 32, 64>}, {pipeline_mode = #tpu.pipeline_mode<synchronous>, transform_indices = @transform_7, window_bounds = array<i64: 4, 64>}, {pipeline_mode = #tpu.pipeline_mode<synchronous>, transform_indices = @transform_8, window_bounds = array<i64: 1, 64>}, {pipeline_mode = #tpu.pipeline_mode<synchronous>, transform_indices = @transform_9, window_bounds = array<i64: 64, 64>}, {pipeline_mode = #tpu.pipeline_mode<synchronous>, transform_indices = @transform_10, window_bounds = array<i64: 1, 64>}, {pipeline_mode = #tpu.pipeline_mode<synchronous>, transform_indices = @transform_11, window_bounds = array<i64: 1, 64>}, {pipeline_mode = #tpu.pipeline_mode<synchronous>, transform_indices = @transform_12, window_bounds = array<i64: 1, 2>}, {transform_indices = @transform_13, window_bounds = array<i64: 8, 2>}]} {
    %c0 = arith.constant 0 : index
    %c0_0 = arith.constant 0 : index
    %0 = vector.load %arg1[%c0, %c0_0] : memref<8x32xf32, #tpu.memory_space<vmem>>, vector<8x32xf32>
    %c0_1 = arith.constant 0 : index
    %c0_2 = arith.constant 0 : index
    %1 = vector.load %arg2[%c0_1, %c0_2] : memref<8x4xf32, #tpu.memory_space<vmem>>, vector<8x4xf32>
    %c0_3 = arith.constant 0 : index
    %c0_4 = arith.constant 0 : index
    %2 = vector.load %arg3[%c0_3, %c0_4] : memref<32x32xf32, #tpu.memory_space<vmem>>, vector<32x32xf32>
    %cst = arith.constant dense<0.000000e+00> : vector<8x32xf32>
    %3 = tpu.matmul %0, %2, %cst {dimension_numbers = #tpu.dot_dimension_numbers<[1], [0], [0], [1], [0, 0, 1, 1], [], []>} : vector<8x32xf32>, vector<32x32xf32>, vector<8x32xf32> -> vector<8x32xf32>
    %c0_5 = arith.constant 0 : index
    %c0_6 = arith.constant 0 : index
    %4 = vector.load %arg4[%c0_5, %c0_6] : memref<1x32xf32, #tpu.memory_space<vmem>>, vector<1x32xf32>
    %5 = vector.broadcast %4 : vector<1x32xf32> to vector<8x32xf32>
    %6 = arith.addf %3, %5 : vector<8x32xf32>
    %cst_7 = arith.constant dense<0.000000e+00> : vector<8xf32>
    %7 = vector.multi_reduction <add>, %6, %cst_7 [1] : vector<8x32xf32> to vector<8xf32>
    %8 = vector.shape_cast %7 : vector<8xf32> to vector<8x1xf32>
    %cst_8 = arith.constant 3.200000e+01 : f32
    %9 = vector.broadcast %cst_8 : f32 to vector<8x1xf32>
    %10 = arith.divf %8, %9 : vector<8x1xf32>
    %11 = vector.broadcast %10 : vector<8x1xf32> to vector<8x32xf32>
    %12 = arith.subf %6, %11 : vector<8x32xf32>
    %13 = arith.mulf %12, %12 : vector<8x32xf32>
    %cst_9 = arith.constant dense<0.000000e+00> : vector<8xf32>
    %14 = vector.multi_reduction <add>, %13, %cst_9 [1] : vector<8x32xf32> to vector<8xf32>
    %15 = vector.shape_cast %14 : vector<8xf32> to vector<8x1xf32>
    %cst_10 = arith.constant 3.200000e+01 : f32
    %16 = vector.broadcast %cst_10 : f32 to vector<8x1xf32>
    %17 = arith.divf %15, %16 : vector<8x1xf32>
    %18 = vector.broadcast %10 : vector<8x1xf32> to vector<8x32xf32>
    %19 = arith.subf %6, %18 : vector<8x32xf32>
    %cst_11 = arith.constant 9.99999974E-6 : f32
    %20 = vector.broadcast %cst_11 : f32 to vector<8x1xf32>
    %21 = arith.addf %17, %20 : vector<8x1xf32>
    %22 = math.rsqrt %21 : vector<8x1xf32>
    %23 = vector.broadcast %22 : vector<8x1xf32> to vector<8x32xf32>
    %24 = arith.mulf %19, %23 : vector<8x32xf32>
    %c0_12 = arith.constant 0 : index
    %c0_13 = arith.constant 0 : index
    %25 = vector.load %arg5[%c0_12, %c0_13] : memref<1x32xf32, #tpu.memory_space<vmem>>, vector<1x32xf32>
    %26 = vector.broadcast %25 : vector<1x32xf32> to vector<8x32xf32>
    %27 = arith.mulf %24, %26 : vector<8x32xf32>
    %c0_14 = arith.constant 0 : index
    %c0_15 = arith.constant 0 : index
    %28 = vector.load %arg6[%c0_14, %c0_15] : memref<1x32xf32, #tpu.memory_space<vmem>>, vector<1x32xf32>
    %29 = vector.broadcast %28 : vector<1x32xf32> to vector<8x32xf32>
    %30 = arith.addf %27, %29 : vector<8x32xf32>
    %31 = math.tanh %30 : vector<8x32xf32>
    %c0_16 = arith.constant 0 : index
    %c0_17 = arith.constant 0 : index
    %32 = vector.load %arg7[%c0_16, %c0_17] : memref<32x64xf32, #tpu.memory_space<vmem>>, vector<32x64xf32>
    %cst_18 = arith.constant dense<0.000000e+00> : vector<8x64xf32>
    %33 = tpu.matmul %31, %32, %cst_18 {dimension_numbers = #tpu.dot_dimension_numbers<[1], [0], [0], [1], [0, 0, 1, 1], [], []>} : vector<8x32xf32>, vector<32x64xf32>, vector<8x64xf32> -> vector<8x64xf32>
    %c0_19 = arith.constant 0 : index
    %c0_20 = arith.constant 0 : index
    %34 = vector.load %arg8[%c0_19, %c0_20] : memref<4x64xf32, #tpu.memory_space<vmem>>, vector<4x64xf32>
    %cst_21 = arith.constant dense<0.000000e+00> : vector<8x64xf32>
    %35 = tpu.matmul %1, %34, %cst_21 {dimension_numbers = #tpu.dot_dimension_numbers<[1], [0], [0], [1], [0, 0, 1, 1], [], []>} : vector<8x4xf32>, vector<4x64xf32>, vector<8x64xf32> -> vector<8x64xf32>
    %36 = arith.addf %33, %35 : vector<8x64xf32>
    %c0_22 = arith.constant 0 : index
    %c0_23 = arith.constant 0 : index
    %37 = vector.load %arg9[%c0_22, %c0_23] : memref<1x64xf32, #tpu.memory_space<vmem>>, vector<1x64xf32>
    %38 = vector.broadcast %37 : vector<1x64xf32> to vector<8x64xf32>
    %39 = arith.addf %36, %38 : vector<8x64xf32>
    %cst_24 = arith.constant 0.000000e+00 : f32
    %40 = vector.broadcast %cst_24 : f32 to vector<8x64xf32>
    %41 = arith.maximumf %39, %40 : vector<8x64xf32>
    %c0_25 = arith.constant 0 : index
    %c0_26 = arith.constant 0 : index
    %42 = vector.load %arg10[%c0_25, %c0_26] : memref<64x64xf32, #tpu.memory_space<vmem>>, vector<64x64xf32>
    %cst_27 = arith.constant dense<0.000000e+00> : vector<8x64xf32>
    %43 = tpu.matmul %41, %42, %cst_27 {dimension_numbers = #tpu.dot_dimension_numbers<[1], [0], [0], [1], [0, 0, 1, 1], [], []>} : vector<8x64xf32>, vector<64x64xf32>, vector<8x64xf32> -> vector<8x64xf32>
    %c0_28 = arith.constant 0 : index
    %c0_29 = arith.constant 0 : index
    %44 = vector.load %arg11[%c0_28, %c0_29] : memref<1x64xf32, #tpu.memory_space<vmem>>, vector<1x64xf32>
    %45 = vector.broadcast %44 : vector<1x64xf32> to vector<8x64xf32>
    %46 = arith.addf %43, %45 : vector<8x64xf32>
    %cst_30 = arith.constant 0.000000e+00 : f32
    %47 = vector.broadcast %cst_30 : f32 to vector<8x64xf32>
    %48 = arith.maximumf %46, %47 : vector<8x64xf32>
    %c0_31 = arith.constant 0 : index
    %c0_32 = arith.constant 0 : index
    %49 = vector.load %arg12[%c0_31, %c0_32] : memref<1x64xf32, #tpu.memory_space<vmem>>, vector<1x64xf32>
    %50 = vector.broadcast %49 : vector<1x64xf32> to vector<8x64xf32>
    %51 = arith.mulf %48, %50 : vector<8x64xf32>
    %52 = vector.extract_strided_slice %51 {offsets = [0, 0], sizes = [8, 32], strides = [1, 1]} : vector<8x64xf32> to vector<8x32xf32>
    %cst_33 = arith.constant dense<0.000000e+00> : vector<8xf32>
    %53 = vector.multi_reduction <add>, %52, %cst_33 [1] : vector<8x32xf32> to vector<8xf32>
    %54 = vector.shape_cast %53 : vector<8xf32> to vector<8x1xf32>
    %55 = vector.extract_strided_slice %51 {offsets = [0, 32], sizes = [8, 32], strides = [1, 1]} : vector<8x64xf32> to vector<8x32xf32>
    %cst_34 = arith.constant dense<0.000000e+00> : vector<8xf32>
    %56 = vector.multi_reduction <add>, %55, %cst_34 [1] : vector<8x32xf32> to vector<8xf32>
    %57 = vector.shape_cast %56 : vector<8xf32> to vector<8x1xf32>
    %58 = tpu.concatenate %54, %57 in 1 : vector<8x1xf32>, vector<8x1xf32> -> vector<8x2xf32>
    %c0_35 = arith.constant 0 : index
    %c0_36 = arith.constant 0 : index
    %59 = vector.load %arg13[%c0_35, %c0_36] : memref<1x2xf32, #tpu.memory_space<vmem>>, vector<1x2xf32>
    %60 = vector.broadcast %59 : vector<1x2xf32> to vector<8x2xf32>
    %61 = arith.addf %58, %60 : vector<8x2xf32>
    %c0_37 = arith.constant 0 : index
    %c0_38 = arith.constant 0 : index
    %62 = vector.load %arg14[%c0_37, %c0_38] : memref<8x2xf32, #tpu.memory_space<vmem>>, vector<8x2xf32>
    tpu.vector_store %arg14[%c0_37, %c0_38], %61 {strides = array<i32>} : memref<8x2xf32, #tpu.memory_space<vmem>>, vector<8x2xf32>,
    return
  }
  func.func @transform_0(%arg0: i32) -> (i32, i32) {
    %c0_i32 = arith.constant 0 : i32
    %c0_i32_0 = arith.constant 0 : i32
    return %arg0, %c0_i32 : i32, i32
  }
  func.func @transform_1(%arg0: i32) -> (i32, i32) {
    %c0_i32 = arith.constant 0 : i32
    %c0_i32_0 = arith.constant 0 : i32
    return %arg0, %c0_i32 : i32, i32
  }
  func.func @transform_2(%arg0: i32) -> (i32, i32) {
    %c0_i32 = arith.constant 0 : i32
    %c0_i32_0 = arith.constant 0 : i32
    %c0_i32_1 = arith.constant 0 : i32
    return %c0_i32, %c0_i32_0 : i32, i32
  }
  func.func @transform_3(%arg0: i32) -> (i32, i32) {
    %c0_i32 = arith.constant 0 : i32
    %c0_i32_0 = arith.constant 0 : i32
    %c0_i32_1 = arith.constant 0 : i32
    return %c0_i32, %c0_i32_0 : i32, i32
  }
  func.func @transform_4(%arg0: i32) -> (i32, i32) {
    %c0_i32 = arith.constant 0 : i32
    %c0_i32_0 = arith.constant 0 : i32
    %c0_i32_1 = arith.constant 0 : i32
    return %c0_i32, %c0_i32_0 : i32, i32
  }
  func.func @transform_5(%arg0: i32) -> (i32, i32) {
    %c0_i32 = arith.constant 0 : i32
    %c0_i32_0 = arith.constant 0 : i32
    %c0_i32_1 = arith.constant 0 : i32
    return %c0_i32, %c0_i32_0 : i32, i32
  }
  func.func @transform_6(%arg0: i32) -> (i32, i32) {
    %c0_i32 = arith.constant 0 : i32
    %c0_i32_0 = arith.constant 0 : i32
    %c0_i32_1 = arith.constant 0 : i32
    return %c0_i32, %c0_i32_0 : i32, i32
  }
  func.func @transform_7(%arg0: i32) -> (i32, i32) {
    %c0_i32 = arith.constant 0 : i32
    %c0_i32_0 = arith.constant 0 : i32
    %c0_i32_1 = arith.constant 0 : i32
    return %c0_i32, %c0_i32_0 : i32, i32
  }
  func.func @transform_8(%arg0: i32) -> (i32, i32) {
    %c0_i32 = arith.constant 0 : i32
    %c0_i32_0 = arith.constant 0 : i32
    %c0_i32_1 = arith.constant 0 : i32
    return %c0_i32, %c0_i32_0 : i32, i32
  }
  func.func @transform_9(%arg0: i32) -> (i32, i32) {
    %c0_i32 = arith.constant 0 : i32
    %c0_i32_0 = arith.constant 0 : i32
    %c0_i32_1 = arith.constant 0 : i32
    return %c0_i32, %c0_i32_0 : i32, i32
  }
  func.func @transform_10(%arg0: i32) -> (i32, i32) {
    %c0_i32 = arith.constant 0 : i32
    %c0_i32_0 = arith.constant 0 : i32
    %c0_i32_1 = arith.constant 0 : i32
    return %c0_i32, %c0_i32_0 : i32, i32
  }
  func.func @transform_11(%arg0: i32) -> (i32, i32) {
    %c0_i32 = arith.constant 0 : i32
    %c0_i32_0 = arith.constant 0 : i32
    %c0_i32_1 = arith.constant 0 : i32
    return %c0_i32, %c0_i32_0 : i32, i32
  }
  func.func @transform_12(%arg0: i32) -> (i32, i32) {
    %c0_i32 = arith.constant 0 : i32
    %c0_i32_0 = arith.constant 0 : i32
    %c0_i32_1 = arith.constant 0 : i32
    return %c0_i32, %c0_i32_0 : i32, i32
  }
  func.func @transform_13(%arg0: i32) -> (i32, i32) {
    %c0_i32 = arith.constant 0 : i32
    %c0_i32_0 = arith.constant 0 : i32
    return %arg0, %c0_i32 : i32, i32
  }
}

</mosaic_0001>

<llo_original>
// kernel: tpu_custom_call.1
$region0: #{tpu_custom_call.1}
  #allocation0 [shape = 'u32[]', space=smem, size = 0x4, offset = 0x4, fixed_abs, tag = 'smem constant byte address 0x4 - core index']
  #allocation1 [shape = 'u32[72,128]{1,0:T(1,128)}', space=vmem, size = 0x9000, scoped, tag = 'internal scratch']
  %s0 = inlined_call_operand.vmem [shape: f32[16,32], index: 0, kind: input, shape index: {}]
  %s1 = inlined_call_operand.vmem [shape: f32[16,4], index: 1, kind: input, shape index: {}]
  %s2 = inlined_call_operand.hbm [shape: f32[32,32], index: 2, kind: input, shape index: {}]
  %s3 = inlined_call_operand.vmem [shape: f32[1,32], index: 3, kind: input, shape index: {}]
  %s4 = inlined_call_operand.vmem [shape: f32[1,32], index: 4, kind: input, shape index: {}]
  %s5 = inlined_call_operand.vmem [shape: f32[1,32], index: 5, kind: input, shape index: {}]
  %s6 = inlined_call_operand.hbm [shape: f32[32,64], index: 6, kind: input, shape index: {}]
  %s7 = inlined_call_operand.vmem [shape: f32[4,64], index: 7, kind: input, shape index: {}]
  %s8 = inlined_call_operand.vmem [shape: f32[1,64], index: 8, kind: input, shape index: {}]
  %s9 = inlined_call_operand.hbm [shape: f32[64,64], index: 9, kind: input, shape index: {}]
  %s10 = inlined_call_operand.vmem [shape: f32[1,64], index: 10, kind: input, shape index: {}]
  %s11 = inlined_call_operand.vmem [shape: f32[1,64], index: 11, kind: input, shape index: {}]
  %s12 = inlined_call_operand.vmem [shape: f32[1,2], index: 12, kind: input, shape index: {}]
  %s13 = inlined_call_operand.vmem [shape: f32[16,2], index: 13, kind: output, shape index: {}]
  %s14 = sld [smem:[#allocation0]]
  $region97: #{tpu_custom_call.1} parent=0
    _
  %s16 = ssub.s32 1, %s14
  %s17 = scalar_select 0, %s16, %s14
  $region1: #{tpu_custom_call.1} parent=0
    #allocation2 [shape = 'u8[16384]{0}', space=vmem, size = 0x4000, scoped, tag = 'input window, operand 2, single buffered']
    #allocation3 [shape = 's32[2]{0}', space=sflag, size = 0x8, scoped, tag = 'scoped memory for tpu_custom_call.1']
    #allocation4 [shape = 'u8[16384]{0}', space=vmem, size = 0x4000, scoped, tag = 'input window, operand 6, single buffered']
    #allocation5 [shape = 's32[1]{0}', space=sflag, size = 0x4, scoped, tag = 'scoped memory for tpu_custom_call.1']
    #allocation6 [shape = 'u8[32768]{0}', space=vmem, size = 0x8000, scoped, tag = 'input window, operand 9, single buffered']
    %18 = vsyncpa [#allocation3], 0
    %19 = vsyncpa [#allocation5], 0
    loop: start=0, step=1, limit=4
    $region2: #{tpu_custom_call.1} parent=1 // loop_pre_header
      _
    $region3: #{tpu_custom_call.1} parent=1 // loop_header
      %s21 = sphi 0, %s25
      %p22 = scmp.ge.s32.totalorder %s21, 4
      %s31 = sphi 0, %s33
      %s34 = sphi 0, %s31
      %s35 = sphi 0, %s34
      %s51 = sphi 0, %s35
      %s57 = sphi 0, %s59
      %s60 = sphi 0, %s57
      %s61 = sphi 0, %s60
      %s77 = sphi 0, %s61
      %s81 = sphi 0, %s81
      %s83 = sphi 0, %s81
      %s84 = sphi 0, %s83
      %s98 = sphi 0, %s84
      %s102 = sphi 0, %s102
      %s104 = sphi 0, %s102
      %s105 = sphi 0, %s104
      %s119 = sphi 0, %s105
      %s123 = sphi 0, %s123
      %s125 = sphi 0, %s123
      %s126 = sphi 0, %s125
      %s140 = sphi 0, %s126
      %s144 = sphi 0, %s144
      %s146 = sphi 0, %s144
      %s147 = sphi 0, %s146
      %s161 = sphi 0, %s147
      %s165 = sphi 0, %s165
      %s167 = sphi 0, %s165
      %s168 = sphi 0, %s167
      %s182 = sphi 0, %s168
      %s186 = sphi 0, %s186
      %s188 = sphi 0, %s186
      %s189 = sphi 0, %s188
      %s203 = sphi 0, %s189
      %s207 = sphi 0, %s207
      %s209 = sphi 0, %s207
      %s210 = sphi 0, %s209
      %s224 = sphi 0, %s210
      %s228 = sphi 0, %s228
      %s230 = sphi 0, %s228
      %s231 = sphi 0, %s230
      %s245 = sphi 0, %s231
      %s249 = sphi 0, %s249
      %s251 = sphi 0, %s249
      %s252 = sphi 0, %s251
      %s266 = sphi 0, %s252
      %s270 = sphi 0, %s270
      %s272 = sphi 0, %s270
      %s273 = sphi 0, %s272
      %s287 = sphi 0, %s273
      %s291 = sphi 0, %s291
      %s293 = sphi 0, %s291
      %s294 = sphi 0, %s293
      %s308 = sphi 0, %s294
      %s314 = sphi 0, %s316
      %s317 = sphi 0, %s314
      %s318 = sphi 0, %s317
      %s334 = sphi 0, %s318
    $region4: #{tpu_custom_call.1} parent=1 // loop_header_branch
      %24 = sbr.rel (%p22) target = $region8
    $region5: #{tpu_custom_call.1} parent=1 // loop_body
      %s26 = ssub.s32 %s21, 1
      %s27 = ssub.s32 %s21, 2
      %s28 = sadd.s32 %s21, 1
      %s29 = ssub.s32 %s21, %s28
      %p30 = scmp.eq.s32.totalorder %s29, 0
      %s32 = sadd.s32 %s31, 1
      %s33 = scalar_select %p30, %s31, %s32
      %p36 = pneg %p30
      %p37 = scmp.eq.s32.totalorder %s21, 1
      %p38 = por %p36, %p37
      %p39 = scmp.ne.s32.totalorder %s31, %s34
      %p40 = scmp.eq.s32.totalorder %s21, 0
      %p41 = por %p39, %p40
      %p42 = scmp.ne.s32.totalorder %s31, %s34
      %p43 = scmp.eq.s32.totalorder %s26, 1
      %p44 = por %p42, %p43
      %p45 = scmp.ne.s32.totalorder %s34, %s35
      %p46 = scmp.eq.s32.totalorder %s26, 0
      %p47 = por %p45, %p46
      %p48 = scmp.ne.s32.totalorder %s34, %s35
      %p49 = scmp.eq.s32.totalorder %s27, 1
      %p50 = por %p48, %p49
      %p52 = scmp.ne.s32.totalorder %s35, %s51
      %p53 = scmp.eq.s32.totalorder %s27, 0
      %p54 = por %p52, %p53
      %s55 = ssub.s32 %s21, %s28
      %p56 = scmp.eq.s32.totalorder %s55, 0
      %s58 = sadd.s32 %s57, 1
      %s59 = scalar_select %p56, %s57, %s58
      %p62 = pneg %p56
      %p63 = scmp.eq.s32.totalorder %s21, 1
      %p64 = por %p62, %p63
      %p65 = scmp.ne.s32.totalorder %s57, %s60
      %p66 = scmp.eq.s32.totalorder %s21, 0
      %p67 = por %p65, %p66
      %p68 = scmp.ne.s32.totalorder %s57, %s60
      %p69 = scmp.eq.s32.totalorder %s26, 1
      %p70 = por %p68, %p69
      %p71 = scmp.ne.s32.totalorder %s60, %s61
      %p72 = scmp.eq.s32.totalorder %s26, 0
      %p73 = por %p71, %p72
      %p74 = scmp.ne.s32.totalorder %s60, %s61
      %p75 = scmp.eq.s32.totalorder %s27, 1
      %p76 = por %p74, %p75
      %p78 = scmp.ne.s32.totalorder %s61, %s77
      %p79 = scmp.eq.s32.totalorder %s27, 0
      %p80 = por %p78, %p79
      %s82 = sadd.s32 %s81, 1
      %p85 = scmp.eq.s32.totalorder %s21, 1
      %p86 = scmp.ne.s32.totalorder %s81, %s83
      %p87 = scmp.eq.s32.totalorder %s21, 0
      %p88 = por %p86, %p87
      %p89 = scmp.ne.s32.totalorder %s81, %s83
      %p90 = scmp.eq.s32.totalorder %s26, 1
      %p91 = por %p89, %p90
      %p92 = scmp.ne.s32.totalorder %s83, %s84
      %p93 = scmp.eq.s32.totalorder %s26, 0
      %p94 = por %p92, %p93
      %p95 = scmp.ne.s32.totalorder %s83, %s84
      %p96 = scmp.eq.s32.totalorder %s27, 1
      %p97 = por %p95, %p96
      %p99 = scmp.ne.s32.totalorder %s84, %s98
      %p100 = scmp.eq.s32.totalorder %s27, 0
      %p101 = por %p99, %p100
      %s103 = sadd.s32 %s102, 1
      %p106 = scmp.eq.s32.totalorder %s21, 1
      %p107 = scmp.ne.s32.totalorder %s102, %s104
      %p108 = scmp.eq.s32.totalorder %s21, 0
      %p109 = por %p107, %p108
      %p110 = scmp.ne.s32.totalorder %s102, %s104
      %p111 = scmp.eq.s32.totalorder %s26, 1
      %p112 = por %p110, %p111
      %p113 = scmp.ne.s32.totalorder %s104, %s105
      %p114 = scmp.eq.s32.totalorder %s26, 0
      %p115 = por %p113, %p114
      %p116 = scmp.ne.s32.totalorder %s104, %s105
      %p117 = scmp.eq.s32.totalorder %s27, 1
      %p118 = por %p116, %p117
      %p120 = scmp.ne.s32.totalorder %s105, %s119
      %p121 = scmp.eq.s32.totalorder %s27, 0
      %p122 = por %p120, %p121
      %s124 = sadd.s32 %s123, 1
      %p127 = scmp.eq.s32.totalorder %s21, 1
      %p128 = scmp.ne.s32.totalorder %s123, %s125
      %p129 = scmp.eq.s32.totalorder %s21, 0
      %p130 = por %p128, %p129
      %p131 = scmp.ne.s32.totalorder %s123, %s125
      %p132 = scmp.eq.s32.totalorder %s26, 1
      %p133 = por %p131, %p132
      %p134 = scmp.ne.s32.totalorder %s125, %s126
      %p135 = scmp.eq.s32.totalorder %s26, 0
      %p136 = por %p134, %p135
      %p137 = scmp.ne.s32.totalorder %s125, %s126
      %p138 = scmp.eq.s32.totalorder %s27, 1
      %p139 = por %p137, %p138
      %p141 = scmp.ne.s32.totalorder %s126, %s140
      %p142 = scmp.eq.s32.totalorder %s27, 0
      %p143 = por %p141, %p142
      %s145 = sadd.s32 %s144, 1
      %p148 = scmp.eq.s32.totalorder %s21, 1
      %p149 = scmp.ne.s32.totalorder %s144, %s146
      %p150 = scmp.eq.s32.totalorder %s21, 0
      %p151 = por %p149, %p150
      %p152 = scmp.ne.s32.totalorder %s144, %s146
      %p153 = scmp.eq.s32.totalorder %s26, 1
      %p154 = por %p152, %p153
      %p155 = scmp.ne.s32.totalorder %s146, %s147
      %p156 = scmp.eq.s32.totalorder %s26, 0
      %p157 = por %p155, %p156
      %p158 = scmp.ne.s32.totalorder %s146, %s147
      %p159 = scmp.eq.s32.totalorder %s27, 1
      %p160 = por %p158, %p159
      %p162 = scmp.ne.s32.totalorder %s147, %s161
      %p163 = scmp.eq.s32.totalorder %s27, 0
      %p164 = por %p162, %p163
      %s166 = sadd.s32 %s165, 1
      %p169 = scmp.eq.s32.totalorder %s21, 1
      %p170 = scmp.ne.s32.totalorder %s165, %s167
      %p171 = scmp.eq.s32.totalorder %s21, 0
      %p172 = por %p170, %p171
      %p173 = scmp.ne.s32.totalorder %s165, %s167
      %p174 = scmp.eq.s32.totalorder %s26, 1
      %p175 = por %p173, %p174
      %p176 = scmp.ne.s32.totalorder %s167, %s168
      %p177 = scmp.eq.s32.totalorder %s26, 0
      %p178 = por %p176, %p177
      %p179 = scmp.ne.s32.totalorder %s167, %s168
      %p180 = scmp.eq.s32.totalorder %s27, 1
      %p181 = por %p179, %p180
      %p183 = scmp.ne.s32.totalorder %s168, %s182
      %p184 = scmp.eq.s32.totalorder %s27, 0
      %p185 = por %p183, %p184
      %s187 = sadd.s32 %s186, 1
      %p190 = scmp.eq.s32.totalorder %s21, 1
      %p191 = scmp.ne.s32.totalorder %s186, %s188
      %p192 = scmp.eq.s32.totalorder %s21, 0
      %p193 = por %p191, %p192
      %p194 = scmp.ne.s32.totalorder %s186, %s188
      %p195 = scmp.eq.s32.totalorder %s26, 1
      %p196 = por %p194, %p195
      %p197 = scmp.ne.s32.totalorder %s188, %s189
      %p198 = scmp.eq.s32.totalorder %s26, 0
      %p199 = por %p197, %p198
      %p200 = scmp.ne.s32.totalorder %s188, %s189
      %p201 = scmp.eq.s32.totalorder %s27, 1
      %p202 = por %p200, %p201
      %p204 = scmp.ne.s32.totalorder %s189, %s203
      %p205 = scmp.eq.s32.totalorder %s27, 0
      %p206 = por %p204, %p205
      %s208 = sadd.s32 %s207, 1
      %p211 = scmp.eq.s32.totalorder %s21, 1
      %p212 = scmp.ne.s32.totalorder %s207, %s209
      %p213 = scmp.eq.s32.totalorder %s21, 0
      %p214 = por %p212, %p213
      %p215 = scmp.ne.s32.totalorder %s207, %s209
      %p216 = scmp.eq.s32.totalorder %s26, 1
      %p217 = por %p215, %p216
      %p218 = scmp.ne.s32.totalorder %s209, %s210
      %p219 = scmp.eq.s32.totalorder %s26, 0
      %p220 = por %p218, %p219
      %p221 = scmp.ne.s32.totalorder %s209, %s210
      %p222 = scmp.eq.s32.totalorder %s27, 1
      %p223 = por %p221, %p222
      %p225 = scmp.ne.s32.totalorder %s210, %s224
      %p226 = scmp.eq.s32.totalorder %s27, 0
      %p227 = por %p225, %p226
      %s229 = sadd.s32 %s228, 1
      %p232 = scmp.eq.s32.totalorder %s21, 1
      %p233 = scmp.ne.s32.totalorder %s228, %s230
      %p234 = scmp.eq.s32.totalorder %s21, 0
      %p235 = por %p233, %p234
      %p236 = scmp.ne.s32.totalorder %s228, %s230
      %p237 = scmp.eq.s32.totalorder %s26, 1
      %p238 = por %p236, %p237
      %p239 = scmp.ne.s32.totalorder %s230, %s231
      %p240 = scmp.eq.s32.totalorder %s26, 0
      %p241 = por %p239, %p240
      %p242 = scmp.ne.s32.totalorder %s230, %s231
      %p243 = scmp.eq.s32.totalorder %s27, 1
      %p244 = por %p242, %p243
      %p246 = scmp.ne.s32.totalorder %s231, %s245
      %p247 = scmp.eq.s32.totalorder %s27, 0
      %p248 = por %p246, %p247
      %s250 = sadd.s32 %s249, 1
      %p253 = scmp.eq.s32.totalorder %s21, 1
      %p254 = scmp.ne.s32.totalorder %s249, %s251
      %p255 = scmp.eq.s32.totalorder %s21, 0
      %p256 = por %p254, %p255
      %p257 = scmp.ne.s32.totalorder %s249, %s251
      %p258 = scmp.eq.s32.totalorder %s26, 1
      %p259 = por %p257, %p258
      %p260 = scmp.ne.s32.totalorder %s251, %s252
      %p261 = scmp.eq.s32.totalorder %s26, 0
      %p262 = por %p260, %p261
      %p263 = scmp.ne.s32.totalorder %s251, %s252
      %p264 = scmp.eq.s32.totalorder %s27, 1
      %p265 = por %p263, %p264
      %p267 = scmp.ne.s32.totalorder %s252, %s266
      %p268 = scmp.eq.s32.totalorder %s27, 0
      %p269 = por %p267, %p268
      %s271 = sadd.s32 %s270, 1
      %p274 = scmp.eq.s32.totalorder %s21, 1
      %p275 = scmp.ne.s32.totalorder %s270, %s272
      %p276 = scmp.eq.s32.totalorder %s21, 0
      %p277 = por %p275, %p276
      %p278 = scmp.ne.s32.totalorder %s270, %s272
      %p279 = scmp.eq.s32.totalorder %s26, 1
      %p280 = por %p278, %p279
      %p281 = scmp.ne.s32.totalorder %s272, %s273
      %p282 = scmp.eq.s32.totalorder %s26, 0
      %p283 = por %p281, %p282
      %p284 = scmp.ne.s32.totalorder %s272, %s273
      %p285 = scmp.eq.s32.totalorder %s27, 1
      %p286 = por %p284, %p285
      %p288 = scmp.ne.s32.totalorder %s273, %s287
      %p289 = scmp.eq.s32.totalorder %s27, 0
      %p290 = por %p288, %p289
      %s292 = sadd.s32 %s291, 1
      %p295 = scmp.eq.s32.totalorder %s21, 1
      %p296 = scmp.ne.s32.totalorder %s291, %s293
      %p297 = scmp.eq.s32.totalorder %s21, 0
      %p298 = por %p296, %p297
      %p299 = scmp.ne.s32.totalorder %s291, %s293
      %p300 = scmp.eq.s32.totalorder %s26, 1
      %p301 = por %p299, %p300
      %p302 = scmp.ne.s32.totalorder %s293, %s294
      %p303 = scmp.eq.s32.totalorder %s26, 0
      %p304 = por %p302, %p303
      %p305 = scmp.ne.s32.totalorder %s293, %s294
      %p306 = scmp.eq.s32.totalorder %s27, 1
      %p307 = por %p305, %p306
      %p309 = scmp.ne.s32.totalorder %s294, %s308
      %p310 = scmp.eq.s32.totalorder %s27, 0
      %p311 = por %p309, %p310
      %s312 = ssub.s32 %s21, %s28
      %p313 = scmp.eq.s32.totalorder %s312, 0
      %s315 = sadd.s32 %s314, 1
      %s316 = scalar_select %p313, %s314, %s315
      %p319 = pneg %p313
      %p320 = scmp.eq.s32.totalorder %s21, 1
      %p321 = por %p319, %p320
      %p322 = scmp.ne.s32.totalorder %s314, %s317
      %p323 = scmp.eq.s32.totalorder %s21, 0
      %p324 = por %p322, %p323
      %p325 = scmp.ne.s32.totalorder %s314, %s317
      %p326 = scmp.eq.s32.totalorder %s26, 1
      %p327 = por %p325, %p326
      %p328 = scmp.ne.s32.totalorder %s317, %s318
      %p329 = scmp.eq.s32.totalorder %s26, 0
      %p330 = por %p328, %p329
      %p331 = scmp.ne.s32.totalorder %s317, %s318
      %p332 = scmp.eq.s32.totalorder %s27, 1
      %p333 = por %p331, %p332
      %p335 = scmp.ne.s32.totalorder %s318, %s334
      %p336 = scmp.eq.s32.totalorder %s27, 0
      %p337 = por %p335, %p336
      %p338 = scmp.le.s32.totalorder 1, %s21
      %p339 = scmp.lt.s32.totalorder %s21, 3
      %p340 = pnand %p338, %p339
      %p341 = pneg %p340
      // Predicated region
      $region9: #{tpu_custom_call.1} parent=5 // pred_check
        _
      $region10: #{tpu_custom_call.1} parent=5 // pred_check_branch
        %343 = sbr.rel (%p340) target = $region12
      $region11: #{tpu_custom_call.1} parent=5 // pred_region
        %s344 = ssub.s32 %s21, 1
        // Predicated region
        $region13: #{tpu_custom_call.1} parent=11 // pred_check
          %p345 = pneg %p94
        $region14: #{tpu_custom_call.1} parent=11 // pred_check_branch
          %347 = sbr.rel (%p345) target = $region16
        $region15: #{tpu_custom_call.1} parent=11 // pred_region
          %349 = vsyncadd [#allocation3], 0
          %s350 = sshll.u32 %s2, 4
          %s351 = int_to_ptr.hbm [resolvable:$true] %s350
          %s352 = sshll.u32 [#allocation2], 4
          %s353 = int_to_ptr.vmem [resolvable:$true] %s352
          %358 = dma.hbm_to_vmem [thread:$0]  %s351, 512, %s353, [#allocation3], 128, 128, 8
        $region16: #{tpu_custom_call.1} parent=11 // pred_fallthru
          _
        // Predicated region
        $region17: #{tpu_custom_call.1} parent=11 // pred_check
          %p359 = pneg %p115
        $region18: #{tpu_custom_call.1} parent=11 // pred_check_branch
          %361 = sbr.rel (%p359) target = $region20
        $region19: #{tpu_custom_call.1} parent=11 // pred_region
          _
        $region20: #{tpu_custom_call.1} parent=11 // pred_fallthru
          _
        // Predicated region
        $region21: #{tpu_custom_call.1} parent=11 // pred_check
          %p362 = pneg %p136
        $region22: #{tpu_custom_call.1} parent=11 // pred_check_branch
          %364 = sbr.rel (%p362) target = $region24
        $region23: #{tpu_custom_call.1} parent=11 // pred_region
          _
        $region24: #{tpu_custom_call.1} parent=11 // pred_fallthru
          _
        // Predicated region
        $region25: #{tpu_custom_call.1} parent=11 // pred_check
          %p365 = pneg %p157
        $region26: #{tpu_custom_call.1} parent=11 // pred_check_branch
          %367 = sbr.rel (%p365) target = $region28
        $region27: #{tpu_custom_call.1} parent=11 // pred_region
          _
        $region28: #{tpu_custom_call.1} parent=11 // pred_fallthru
          _
        // Predicated region
        $region29: #{tpu_custom_call.1} parent=11 // pred_check
          %p368 = pneg %p178
        $region30: #{tpu_custom_call.1} parent=11 // pred_check_branch
          %370 = sbr.rel (%p368) target = $region32
        $region31: #{tpu_custom_call.1} parent=11 // pred_region
          %372 = vsyncadd [#allocation5], 0
          %s373 = sshll.u32 %s6, 4
          %s374 = int_to_ptr.hbm [resolvable:$true] %s373
          %s375 = sshll.u32 [#allocation4], 4
          %s376 = int_to_ptr.vmem [resolvable:$true] %s375
          %381 = dma.hbm_to_vmem [thread:$0]  %s374, 512, %s376, [#allocation5], 128, 128, 8
        $region32: #{tpu_custom_call.1} parent=11 // pred_fallthru
          _
        // Predicated region
        $region33: #{tpu_custom_call.1} parent=11 // pred_check
          %p382 = pneg %p199
        $region34: #{tpu_custom_call.1} parent=11 // pred_check_branch
          %384 = sbr.rel (%p382) target = $region36
        $region35: #{tpu_custom_call.1} parent=11 // pred_region
          _
        $region36: #{tpu_custom_call.1} parent=11 // pred_fallthru
          _
        // Predicated region
        $region37: #{tpu_custom_call.1} parent=11 // pred_check
          %p385 = pneg %p220
        $region38: #{tpu_custom_call.1} parent=11 // pred_check_branch
          %387 = sbr.rel (%p385) target = $region40
        $region39: #{tpu_custom_call.1} parent=11 // pred_region
          _
        $region40: #{tpu_custom_call.1} parent=11 // pred_fallthru
          _
        // Predicated region
        $region41: #{tpu_custom_call.1} parent=11 // pred_check
          %p388 = pneg %p241
        $region42: #{tpu_custom_call.1} parent=11 // pred_check_branch
          %390 = sbr.rel (%p388) target = $region44
        $region43: #{tpu_custom_call.1} parent=11 // pred_region
          %392 = vsyncadd [#allocation5], 0
          %s393 = sshll.u32 %s9, 4
          %s394 = int_to_ptr.hbm [resolvable:$true] %s393
          %s395 = sshll.u32 [#allocation6], 4
          %s396 = int_to_ptr.vmem [resolvable:$true] %s395
          %401 = dma.hbm_to_vmem [thread:$0]  %s394, 1024, %s396, [#allocation5], 128, 128, 8
        $region44: #{tpu_custom_call.1} parent=11 // pred_fallthru
          _
        // Predicated region
        $region45: #{tpu_custom_call.1} parent=11 // pred_check
          %p402 = pneg %p262
        $region46: #{tpu_custom_call.1} parent=11 // pred_check_branch
          %404 = sbr.rel (%p402) target = $region48
        $region47: #{tpu_custom_call.1} parent=11 // pred_region
          _
        $region48: #{tpu_custom_call.1} parent=11 // pred_fallthru
          _
        // Predicated region
        $region49: #{tpu_custom_call.1} parent=11 // pred_check
          %p405 = pneg %p283
        $region50: #{tpu_custom_call.1} parent=11 // pred_check_branch
          %407 = sbr.rel (%p405) target = $region52
        $region51: #{tpu_custom_call.1} parent=11 // pred_region
          _
        $region52: #{tpu_custom_call.1} parent=11 // pred_fallthru
          _
        // Predicated region
        $region53: #{tpu_custom_call.1} parent=11 // pred_check
          %p408 = pneg %p304
        $region54: #{tpu_custom_call.1} parent=11 // pred_check_branch
          %410 = sbr.rel (%p408) target = $region56
        $region55: #{tpu_custom_call.1} parent=11 // pred_region
          _
        $region56: #{tpu_custom_call.1} parent=11 // pred_fallthru
          _
      $region12: #{tpu_custom_call.1} parent=5 // pred_fallthru
        _
      %p411 = scmp.lt.s32.totalorder %s21, 2
      // Predicated region
      $region57: #{tpu_custom_call.1} parent=5 // pred_check
        %p412 = pneg %p411
      $region58: #{tpu_custom_call.1} parent=5 // pred_check_branch
        %414 = sbr.rel (%p412) target = $region60
      $region59: #{tpu_custom_call.1} parent=5 // pred_region
        // Predicated region
        $region61: #{tpu_custom_call.1} parent=59 // pred_check
          %p415 = pneg %p41
        $region62: #{tpu_custom_call.1} parent=59 // pred_check_branch
          %417 = sbr.rel (%p415) target = $region64
        $region63: #{tpu_custom_call.1} parent=59 // pred_region
          %p418 = scmp.lt.s32.totalorder %s21, 1
          %s419 = scalar_select %p418, %s21, 1
          %s420 = smul.addr %s419, 8
          %s421 = scalar_lea.vmem %s0, %s420
        $region64: #{tpu_custom_call.1} parent=59 // pred_fallthru
          _
        // Predicated region
        $region65: #{tpu_custom_call.1} parent=59 // pred_check
          %p422 = pneg %p67
        $region66: #{tpu_custom_call.1} parent=59 // pred_check_branch
          %424 = sbr.rel (%p422) target = $region68
        $region67: #{tpu_custom_call.1} parent=59 // pred_region
          %p425 = scmp.lt.s32.totalorder %s21, 1
          %s426 = scalar_select %p425, %s21, 1
          %s427 = smul.addr %s426, 8
          %s428 = scalar_lea.vmem %s1, %s427
        $region68: #{tpu_custom_call.1} parent=59 // pred_fallthru
          _
      $region60: #{tpu_custom_call.1} parent=5 // pred_fallthru
        _
      %p429 = scmp.le.s32.totalorder 1, %s21
      %p430 = scmp.lt.s32.totalorder %s21, 3
      %p431 = pnand %p429, %p430
      %p432 = pneg %p431
      // Predicated region
      $region69: #{tpu_custom_call.1} parent=5 // pred_check
        _
      $region70: #{tpu_custom_call.1} parent=5 // pred_check_branch
        %434 = sbr.rel (%p431) target = $region72
      $region71: #{tpu_custom_call.1} parent=5 // pred_region
        %s435 = ssub.s32 %s21, 1
        // Predicated region
        $region73: #{tpu_custom_call.1} parent=71 // pred_check
          %p436 = pneg %p94
        $region74: #{tpu_custom_call.1} parent=71 // pred_check_branch
          %438 = sbr.rel (%p436) target = $region76
        $region75: #{tpu_custom_call.1} parent=71 // pred_region
          %440 = dma.done [#allocation3], 512
        $region76: #{tpu_custom_call.1} parent=71 // pred_fallthru
          _
        // Predicated region
        $region77: #{tpu_custom_call.1} parent=71 // pred_check
          %p441 = pneg %p178
        $region78: #{tpu_custom_call.1} parent=71 // pred_check_branch
          %443 = sbr.rel (%p441) target = $region80
        $region79: #{tpu_custom_call.1} parent=71 // pred_region
          %445 = dma.done [#allocation5], 512
        $region80: #{tpu_custom_call.1} parent=71 // pred_fallthru
          _
        // Predicated region
        $region81: #{tpu_custom_call.1} parent=71 // pred_check
          %p446 = pneg %p241
        $region82: #{tpu_custom_call.1} parent=71 // pred_check_branch
          %448 = sbr.rel (%p446) target = $region84
        $region83: #{tpu_custom_call.1} parent=71 // pred_region
          %450 = dma.done [#allocation5], 1024
        $region84: #{tpu_custom_call.1} parent=71 // pred_fallthru
          _
        %p451 = scmp.lt.s32.totalorder %s26, 1
        %s452 = scalar_select %p451, %s26, 1
        %s453 = smul.addr %s452, 8
        %s454 = scalar_lea.vmem %s0, %s453
        %p455 = pneg %p47
        %p456 = pneg %p44
        %p457 = scmp.lt.s32.totalorder %s26, 1
        %s458 = scalar_select %p457, %s26, 1
        %s459 = smul.addr %s458, 8
        %s460 = scalar_lea.vmem %s1, %s459
        %p461 = pneg %p73
        %p462 = pneg %p70
        %p463 = pneg %p94
        %p464 = pneg %p91
        %p465 = pneg %p115
        %p466 = pneg %p112
        %p467 = pneg %p136
        %p468 = pneg %p133
        %p469 = pneg %p157
        %p470 = pneg %p154
        %p471 = pneg %p178
        %p472 = pneg %p175
        %p473 = pneg %p199
        %p474 = pneg %p196
        %p475 = pneg %p220
        %p476 = pneg %p217
        %p477 = pneg %p241
        %p478 = pneg %p238
        %p479 = pneg %p262
        %p480 = pneg %p259
        %p481 = pneg %p283
        %p482 = pneg %p280
        %p483 = pneg %p304
        %p484 = pneg %p301
        %p485 = pneg %p330
        %p486 = pneg %p327
        %p487 = scmp.lt.s32.totalorder %s26, 1
        %s488 = scalar_select %p487, %s26, 1
        %s489 = smul.addr %s488, 8
        %s490 = scalar_lea.vmem %s13, %s489
        %p491 = scmp.lt.s32.totalorder %s26, 1
        %s492 = scalar_select %p491, %s26, 1
        %s493 = smul.addr %s492, 8
        %s494 = scalar_lea.vmem %s0, %s493
        %p495 = scmp.lt.s32.totalorder %s26, 1
        %s496 = scalar_select %p495, %s26, 1
        %s497 = smul.addr %s496, 8
        %s498 = scalar_lea.vmem %s1, %s497
        %p499 = scmp.lt.s32.totalorder %s26, 1
        %s500 = scalar_select %p499, %s26, 1
        %s501 = smul.addr %s500, 8
        %s502 = scalar_lea.vmem %s13, %s501
        %v503 = vld [vmem:[%s494] sm:$0xff]
        %v504 = vld [vmem:[%s498] sm:$0xff]
        %v505 = vld [vmem:[#allocation2] sm:$0xff]
        %v506 = vld [vmem:[#allocation2 + $0x8] sm:$0xff]
        %v507 = vld [vmem:[#allocation2 + $0x10] sm:$0xff]
        %v508 = vld [vmem:[#allocation2 + $0x18] sm:$0xff]
        %v509 = vld [vmem:[%s3] sm:$0x1]
        %v511 = vperm.slane %v509, 0
        %vm513 = vcmask 261120
        %v515 = vsel %vm513, %v503, 0
        %517 = vmatpush.msra.mxu0 0.0
        %518 = vmatpush.msra.mxu0 0.0
        %519 = vmatpush.msra.mxu0 0.0
        %520 = vmatpush.msra.mxu0 0.0
        %521 = vmatpush.msra.mxu0 0.0
        %522 = vmatpush.msra.mxu0 0.0
        %523 = vmatpush.msra.mxu0 0.0
        %524 = vmatpush.msra.mxu0 0.0
        %525 = vmatpush.msra.mxu0 0.0
        %526 = vmatpush.msra.mxu0 0.0
        %527 = vmatpush.msra.mxu0 0.0
        %528 = vmatpush.msra.mxu0 0.0
        %529 = vmatpush.msra.mxu0 %v508
        %530 = vmatpush.msra.mxu0 %v507
        %531 = vmatpush.msra.mxu0 %v506
        %532 = vmatpush.msra.mxu0 %v505
        %533 = vmatmul.f32.gmra.mxu0 %v515
        %v534 = vpop.f32.mrf.mxu0
        %v535 = vadd.f32 %v511, %v534
        %536 = vdwg.mxu0
        %v537 = vsel %vm513, %v535, 0.0
        %538 = vadd.xlane.f32.xlu0 %v537
        %v539 = vpop.xlane.xlu0 %538
        %v540 = vrcp.pop 32.0
        %v541 = vmul.f32 32.0, %v540
        %v542 = vsub.f32 1.0, %v541
        %v543 = vmul.f32 %v540, %v542
        %v544 = vadd.f32 %v540, %v543
        %vm545 = vweird.f32 %v540
        %v546 = vsel %vm545, %v540, %v544
        %v547 = vmul.f32 %v539, %v546
        %v548 = vsub.f32 %v535, %v547
        %v549 = vmul.f32 %v548, %v548
        %v550 = vsel %vm513, %v549, 0.0
        %551 = vadd.xlane.f32.xlu0 %v550
        %v552 = vpop.xlane.xlu0 %551
        %v553 = vmul.f32 %v552, %v546
        %v554 = vadd.f32 %v553, 1e-05
        %v555 = vrsqrt.pop %v554
        %v556 = vmul.f32 %v555, %v554
        %v557 = vmul.f32 %v556, %v555
        %v558 = vmul.f32 0.5, %v557
        %v559 = vsub.f32 1.5, %v558
        %v560 = vmul.f32 %v555, %v559
        %vm561 = vweird.f32 %v554
        %vm562 = vweird.f32 %v555
        %vm563 = vmor %vm561, %vm562
        %v564 = vsel %vm563, %v555, %v560
        %v565 = vmul.f32 %v548, %v564
        %v566 = vld [vmem:[%s4] sm:$0x1]
        %v568 = vperm.slane %v566, 0
        %v570 = vmul.f32 %v565, %v568
        %v571 = vld [vmem:[%s5] sm:$0x1]
        %v573 = vperm.slane %v571, 0
        %v575 = vadd.f32 %v570, %v573
        %v576 = vtanh.pop %v575
        %v577 = vld [vmem:[#allocation4] sm:$0xff]
        %v578 = vld [vmem:[#allocation4 + $0x8] sm:$0xff]
        %v579 = vld [vmem:[#allocation4 + $0x10] sm:$0xff]
        %v580 = vld [vmem:[#allocation4 + $0x18] sm:$0xff]
        %v581 = vld [vmem:[%s7] sm:$0xf]
        %vm582 = vcmask 31744
        %v584 = vsel %vm582, %v504, 0
        %vm586 = vcmask 1043456
        %v588 = vsel %vm586, %v581, 0
        %590 = vmatpush.msra.mxu0 0.0
        %591 = vmatpush.msra.mxu0 0.0
        %592 = vmatpush.msra.mxu0 0.0
        %593 = vmatpush.msra.mxu0 0.0
        %594 = vmatpush.msra.mxu0 0.0
        %595 = vmatpush.msra.mxu0 0.0
        %596 = vmatpush.msra.mxu0 0.0
        %597 = vmatpush.msra.mxu0 0.0
        %598 = vmatpush.msra.mxu0 0.0
        %599 = vmatpush.msra.mxu0 0.0
        %600 = vmatpush.msra.mxu0 0.0
        %601 = vmatpush.msra.mxu0 0.0
        %602 = vmatpush.msra.mxu0 0.0
        %603 = vmatpush.msra.mxu0 0.0
        %604 = vmatpush.msra.mxu0 0.0
        %605 = vmatpush.msra.mxu0 %v588
        %606 = vmatmul.f32.gmra.mxu0 %v584
        %v607 = vpop.f32.mrf.mxu0
        %v608 = vadd.f32 0.0, %v607
        %609 = vdwg.mxu0
        %v611 = vsel %vm513, %v576, 0
        %613 = vmatpush.msra.mxu0 0.0
        %614 = vmatpush.msra.mxu0 0.0
        %615 = vmatpush.msra.mxu0 0.0
        %616 = vmatpush.msra.mxu0 0.0
        %617 = vmatpush.msra.mxu0 0.0
        %618 = vmatpush.msra.mxu0 0.0
        %619 = vmatpush.msra.mxu0 0.0
        %620 = vmatpush.msra.mxu0 0.0
        %621 = vmatpush.msra.mxu0 0.0
        %622 = vmatpush.msra.mxu0 0.0
        %623 = vmatpush.msra.mxu0 0.0
        %624 = vmatpush.msra.mxu0 0.0
        %625 = vmatpush.msra.mxu0 %v580
        %626 = vmatpush.msra.mxu0 %v579
        %627 = vmatpush.msra.mxu0 %v578
        %628 = vmatpush.msra.mxu0 %v577
        %629 = vmatmul.f32.gmra.mxu0 %v611
        %v630 = vpop.f32.mrf.mxu0
        %v631 = vadd.f32 %v608, %v630
        %632 = vdwg.mxu0
        %v633 = vld [vmem:[%s8] sm:$0x1]
        %v635 = vperm.slane %v633, 0
        %v637 = vadd.f32 %v631, %v635
        %v638 = vmax.f32 %v637, 0.0
        %v639 = vld [vmem:[#allocation6] sm:$0xff]
        %v640 = vld [vmem:[#allocation6 + $0x8] sm:$0xff]
        %v641 = vld [vmem:[#allocation6 + $0x10] sm:$0xff]
        %v642 = vld [vmem:[#allocation6 + $0x18] sm:$0xff]
        %v643 = vld [vmem:[#allocation6 + $0x20] sm:$0xff]
        %v644 = vld [vmem:[#allocation6 + $0x28] sm:$0xff]
        %v645 = vld [vmem:[#allocation6 + $0x30] sm:$0xff]
        %v646 = vld [vmem:[#allocation6 + $0x38] sm:$0xff]
        %v647 = vld [vmem:[%s10] sm:$0x1]
        %v649 = vperm.slane %v647, 0
        %vm651 = vcmask 523264
        %v653 = vsel %vm651, %v638, 0
        %655 = vmatpush.msra.mxu0 0.0
        %656 = vmatpush.msra.mxu0 0.0
        %657 = vmatpush.msra.mxu0 0.0
        %658 = vmatpush.msra.mxu0 0.0
        %659 = vmatpush.msra.mxu0 0.0
        %660 = vmatpush.msra.mxu0 0.0
        %661 = vmatpush.msra.mxu0 0.0
        %662 = vmatpush.msra.mxu0 0.0
        %663 = vmatpush.msra.mxu0 %v646
        %664 = vmatpush.msra.mxu0 %v645
        %665 = vmatpush.msra.mxu0 %v644
        %666 = vmatpush.msra.mxu0 %v643
        %667 = vmatpush.msra.mxu0 %v642
        %668 = vmatpush.msra.mxu0 %v641
        %669 = vmatpush.msra.mxu0 %v640
        %670 = vmatpush.msra.mxu0 %v639
        %671 = vmatmul.f32.gmra.mxu0 %v653
        %v672 = vpop.f32.mrf.mxu0
        %v673 = vadd.f32 %v649, %v672
        %674 = vdwg.mxu0
        %v675 = vmax.f32 %v673, 0.0
        %v676 = vld [vmem:[%s11] sm:$0x1]
        %v678 = vperm.slane %v676, 0
        %v680 = vmul.f32 %v675, %v678
        %v681 = vsel %vm513, %v680, 0.0
        %682 = vadd.xlane.f32.xlu0 %v681
        %v683 = vpop.xlane.xlu0 %682
        %685 = vrot.lane.b32.xlu0 %v680, 96
        %v686 = vpop.permute.xlu0 %685
        %v688 = vsel %vm513, %v686, 0.0
        %689 = vadd.xlane.f32.xlu0 %v688
        %v690 = vpop.xlane.xlu0 %689
        %vm691 = vcmask 7168
        %v692 = vsel %vm691, %v683, %v690
        %v693 = vld [vmem:[%s12] sm:$0x1]
        %v695 = vperm.slane %v693, 0
        %v697 = vadd.f32 %v692, %v695
        %vm698 = vcmask 15360
        %699 = vst.msk [vmem:[%s502] sm:$0xff] %vm698, %v697
        %p700 = scmp.lt.s32.totalorder %s26, 1
        %s701 = scalar_select %p700, %s26, 1
        %s702 = smul.addr %s701, 8
        %s703 = scalar_lea.vmem %s13, %s702
        // Predicated region
        $region85: #{tpu_custom_call.1} parent=71 // pred_check
          %p704 = pneg %p327
        $region86: #{tpu_custom_call.1} parent=71 // pred_check_branch
          %706 = sbr.rel (%p704) target = $region88
        $region87: #{tpu_custom_call.1} parent=71 // pred_region
          _
        $region88: #{tpu_custom_call.1} parent=71 // pred_fallthru
          _
      $region72: #{tpu_custom_call.1} parent=5 // pred_fallthru
        _
      %p707 = scmp.le.s32.totalorder 2, %s21
      // Predicated region
      $region89: #{tpu_custom_call.1} parent=5 // pred_check
        %p708 = pneg %p707
      $region90: #{tpu_custom_call.1} parent=5 // pred_check_branch
        %710 = sbr.rel (%p708) target = $region92
      $region91: #{tpu_custom_call.1} parent=5 // pred_region
        %s711 = ssub.s32 %s21, 2
        // Predicated region
        $region93: #{tpu_custom_call.1} parent=91 // pred_check
          %p712 = pneg %p333
        $region94: #{tpu_custom_call.1} parent=91 // pred_check_branch
          %714 = sbr.rel (%p712) target = $region96
        $region95: #{tpu_custom_call.1} parent=91 // pred_region
          %p715 = scmp.lt.s32.totalorder %s27, 1
          %s716 = scalar_select %p715, %s27, 1
          %s717 = smul.addr %s716, 8
          %s718 = scalar_lea.vmem %s13, %s717
        $region96: #{tpu_custom_call.1} parent=91 // pred_fallthru
          _
      $region92: #{tpu_custom_call.1} parent=5 // pred_fallthru
        _
    $region6: #{tpu_custom_call.1} parent=1 // loop_footer
      %s25 = sadd.s32 1, %s21
    $region7: #{tpu_custom_call.1} parent=1 // loop_footer_branch
      %20 = sbr.rel target = $region3
    $region8: #{tpu_custom_call.1} parent=1 // loop_exit
      _
    %719 = vsyncpa [#allocation3], 1
    %s720 = scalar_lea.sflag [#allocation3], 1
    %721 = vsyncpa %s720, 1
    %722 = vsyncpa [#allocation5], 1

</llo_original>
